<compile_context>
chip_gen: v6e
topology: v6e:2x2x1
jax: 0.10.0
libtpu: 0.0.40
codegen_flags: <defaults>
</compile_context>

<pallas_src>
import jax
import jax.numpy as jnp
from jax.experimental import pallas as pl
from jax.experimental.pallas import tpu as pltpu

LANE = 128
MAX_TILE_ROWS = 1024          # (1024, 128) f32 = 512 KiB per input tile
SMALL_N_THRESHOLD = 1 << 16   # below this a fused XLA reduce beats a kernel launch


def _num_tensorcores():
    """2 TensorCores on v7x (and megacore v4/v5p), 1 on v5e/v6e."""
    try:
        kind = jax.devices()[0].device_kind.lower()
    except Exception:
        return 1
    return 2 if any(tag in kind for tag in ("v7", "v4", "v5p")) else 1


def _nme_partial_sums(t2d, p2d, rows, num_cores):
    """Per-core (8, 128) partial sums of |t - p| and t over a (rows, 128) slab."""
    tile_rows = min(MAX_TILE_ROWS, (rows // 8) * 8)
    assert tile_rows >= 8 and tile_rows % 8 == 0
    n_blocks = pl.cdiv(rows, tile_rows)
    blocks_per_core = pl.cdiv(n_blocks, num_cores)

    def kernel(t_ref, p_ref, dacc_ref, tacc_ref):
        c = pl.program_id(0)
        j = pl.program_id(1)

        @pl.when(j == 0)
        def _():
            dacc_ref[...] = jnp.zeros_like(dacc_ref)
            tacc_ref[...] = jnp.zeros_like(tacc_ref)

        # Global block index; index_map clamps out-of-range blocks onto the
        # last real block, so we gate compute on the true row count.
        gb = c * blocks_per_core + j
        valid_rows = rows - gb * tile_rows

        # Fast path: interior (full) blocks — no iota / compare / select.
        @pl.when(valid_rows >= tile_rows)
        def _():
            tf = t_ref[...].astype(jnp.float32)
            pf = p_ref[...].astype(jnp.float32)
            dacc_ref[...] += jnp.abs(tf - pf).reshape(-1, 8, LANE).sum(axis=0)
            tacc_ref[...] += tf.reshape(-1, 8, LANE).sum(axis=0)

        # Partial last block: zero the garbage rows before reducing.
        @pl.when(jnp.logical_and(valid_rows > 0, valid_rows < tile_rows))
        def _():
            tf = t_ref[...].astype(jnp.float32)
            pf = p_ref[...].astype(jnp.float32)
            row_id = jax.lax.broadcasted_iota(jnp.int32, (tile_rows, LANE), 0)
            keep = row_id < valid_rows
            d = jnp.where(keep, jnp.abs(tf - pf), 0.0)
            t = jnp.where(keep, tf, 0.0)
            dacc_ref[...] += d.reshape(-1, 8, LANE).sum(axis=0)
            tacc_ref[...] += t.reshape(-1, 8, LANE).sum(axis=0)
        # valid_rows <= 0: clamped duplicate block -> contributes nothing.

    def in_map(c, j):
        return (jnp.minimum(c * blocks_per_core + j, n_blocks - 1), 0)

    out_map = lambda c, j: (c, 0, 0)

    dacc, tacc = pl.pallas_call(
        kernel,
        out_shape=(
            jax.ShapeDtypeStruct((num_cores, 8, LANE), jnp.float32),
            jax.ShapeDtypeStruct((num_cores, 8, LANE), jnp.float32),
        ),
        grid_spec=pltpu.PrefetchScalarGridSpec(
            num_scalar_prefetch=0,
            grid=(num_cores, blocks_per_core),
            in_specs=[
                pl.BlockSpec((tile_rows, LANE), in_map),
                pl.BlockSpec((tile_rows, LANE), in_map),
            ],
            out_specs=[
                pl.BlockSpec((None, 8, LANE), out_map),
                pl.BlockSpec((None, 8, LANE), out_map),
            ],
        ),
        compiler_params=pltpu.CompilerParams(
            # TODO(synk): on v7x, confirm in xprof this axis shards across the
            # 2 TensorCores; if not, switch to pltpu.CORE_PARALLEL.
            dimension_semantics=("parallel", "arbitrary"),
        ),
    )(t2d, p2d)
    return dacc, tacc


def nme(target, pred, eps=1e-12, min_kernel_elems=SMALL_N_THRESHOLD):
    """Matches NME.forward(target, pred): mean(|t - p|) * 100 / sum(t)."""
    assert target.shape == pred.shape
    n = target.size
    # NOTE: eps is unused in the reference forward pass; kept for signature parity.

    rows = n // LANE
    if n < min_kernel_elems or rows < 8:
        # Metric-sized tensors: fused XLA elementwise+reduce is strictly faster
        # than a pallas_call launch.
        t = target.astype(jnp.float32)
        p = pred.astype(jnp.float32)
        return jnp.mean(jnp.abs(t - p)) * 100.0 / jnp.sum(t)

    t_flat = target.reshape(-1)
    p_flat = pred.reshape(-1)
    main = rows * LANE
    tail = n - main

    if tail:
        t2d = t_flat[:main].reshape(rows, LANE)
        p2d = p_flat[:main].reshape(rows, LANE)
    else:
        t2d = t_flat.reshape(rows, LANE)   # free reshape, no copy
        p2d = p_flat.reshape(rows, LANE)

    dacc, tacc = _nme_partial_sums(t2d, p2d, rows, _num_tensorcores())
    abs_sum = jnp.sum(dacc)               # tiny (num_cores, 8, 128) reduce
    t_sum = jnp.sum(tacc)

    if tail:
        # <128-element tail handled with plain jnp; no pad copy of the bulk.
        tt = t_flat[main:].astype(jnp.float32)
        pt = p_flat[main:].astype(jnp.float32)
        abs_sum = abs_sum + jnp.sum(jnp.abs(tt - pt))
        t_sum = t_sum + jnp.sum(tt)

    l1_loss = abs_sum / jnp.float32(n)    # nn.L1Loss(): mean reduction
    return l1_loss * 100.0 / t_sum


if __name__ == "__main__":
    key = jax.random.PRNGKey(0)
    k1, k2, k3, k4 = jax.random.split(key, 4)

    # Small image-style (NCHW) input; n % 128 == 0 -> zero-copy reshape path.
    target = jax.random.uniform(k1, (2, 4, 16, 16), dtype=jnp.float32)
    pred = target + 0.05 * jax.random.normal(k2, (2, 4, 16, 16), dtype=jnp.float32)
    out = nme(target, pred, min_kernel_elems=0)      # force the Pallas path
    out = jax.block_until_ready(out)
    ref = jnp.mean(jnp.abs(target - pred)) * 100.0 / jnp.sum(target)
    assert jnp.allclose(out, ref, rtol=1e-5, atol=1e-6), (out, ref)

    # Odd-sized input exercising the partial-block mask and the <128 tail.
    t2 = jax.random.uniform(k3, (2, 3, 19, 23), dtype=jnp.float32)
    p2 = t2 + 0.05 * jax.random.normal(k4, (2, 3, 19, 23), dtype=jnp.float32)
    out2 = jax.block_until_ready(nme(t2, p2, min_kernel_elems=0))
    ref2 = jnp.mean(jnp.abs(t2 - p2)) * 100.0 / jnp.sum(t2)
    assert jnp.allclose(out2, ref2, rtol=1e-5, atol=1e-6), (out2, ref2)

    # Default threshold path (tiny-tensor jnp fast path).
    out3 = jax.block_until_ready(nme(target, pred))
    assert jnp.allclose(out3, ref, rtol=1e-5, atol=1e-6), (out3, ref)

    print("KERNEL_OK")
</pallas_src>

<mosaic_0001>
module attributes {stable_mosaic.version = 11 : i64} {
  func.func @kernel(%arg0: i32, %arg1: i32, %arg2: memref<16x128xf32, #tpu.memory_space<vmem>>, %arg3: memref<16x128xf32, #tpu.memory_space<vmem>>, %arg4: memref<1x8x128xf32, #tpu.memory_space<vmem>>, %arg5: memref<1x8x128xf32, #tpu.memory_space<vmem>>) attributes {dimension_semantics = [#tpu.dimension_semantics<parallel>, #tpu.dimension_semantics<arbitrary>], iteration_bounds = array<i64: 1, 1>, scalar_prefetch = 0 : i64, scratch_operands = 0 : i64, tpu.core_type = #tpu.core_type<tc>, window_params = [{transform_indices = @transform_0, window_bounds = array<i64: 16, 128>}, {transform_indices = @transform_1, window_bounds = array<i64: 16, 128>}, {transform_indices = @transform_2, window_bounds = array<i64: 1, 8, 128>}, {transform_indices = @transform_3, window_bounds = array<i64: 1, 8, 128>}]} {
    %c0_i32 = arith.constant 0 : i32
    %0 = arith.cmpi eq, %arg1, %c0_i32 : i32
    %1 = arith.extui %0 : i1 to i32
    %c0_i32_0 = arith.constant 0 : i32
    %2 = arith.cmpi ne, %1, %c0_i32_0 : i32
    scf.if %2 {
      %cst = arith.constant 0.000000e+00 : f32
      %15 = vector.broadcast %cst : f32 to vector<8x128xf32>
      %c0 = arith.constant 0 : index
      %c0_7 = arith.constant 0 : index
      %c0_8 = arith.constant 0 : index
      %16 = vector.load %arg4[%c0, %c0_7, %c0_8] : memref<1x8x128xf32, #tpu.memory_space<vmem>>, vector<1x8x128xf32>
      %17 = vector.shape_cast %16 : vector<1x8x128xf32> to vector<8x128xf32>
      %18 = vector.shape_cast %15 : vector<8x128xf32> to vector<1x8x128xf32>
      tpu.vector_store %arg4[%c0, %c0_7, %c0_8], %18 {strides = array<i32>} : memref<1x8x128xf32, #tpu.memory_space<vmem>>, vector<1x8x128xf32>,
      %cst_9 = arith.constant 0.000000e+00 : f32
      %19 = vector.broadcast %cst_9 : f32 to vector<8x128xf32>
      %c0_10 = arith.constant 0 : index
      %c0_11 = arith.constant 0 : index
      %c0_12 = arith.constant 0 : index
      %20 = vector.load %arg5[%c0_10, %c0_11, %c0_12] : memref<1x8x128xf32, #tpu.memory_space<vmem>>, vector<1x8x128xf32>
      %21 = vector.shape_cast %20 : vector<1x8x128xf32> to vector<8x128xf32>
      %22 = vector.shape_cast %19 : vector<8x128xf32> to vector<1x8x128xf32>
      tpu.vector_store %arg5[%c0_10, %c0_11, %c0_12], %22 {strides = array<i32>} : memref<1x8x128xf32, #tpu.memory_space<vmem>>, vector<1x8x128xf32>,
    } else {
    }
    %c1_i32 = arith.constant 1 : i32
    %3 = arith.muli %arg0, %c1_i32 : i32
    %4 = arith.addi %3, %arg1 : i32
    %c16_i32 = arith.constant 16 : i32
    %5 = arith.muli %4, %c16_i32 : i32
    %c16_i32_1 = arith.constant 16 : i32
    %6 = arith.subi %c16_i32_1, %5 : i32
    %c16_i32_2 = arith.constant 16 : i32
    %7 = arith.cmpi sge, %6, %c16_i32_2 : i32
    %8 = arith.extui %7 : i1 to i32
    %c0_i32_3 = arith.constant 0 : i32
    %9 = arith.cmpi ne, %8, %c0_i32_3 : i32
    scf.if %9 {
      %c0 = arith.constant 0 : index
      %c0_7 = arith.constant 0 : index
      %15 = vector.load %arg2[%c0, %c0_7] : memref<16x128xf32, #tpu.memory_space<vmem>>, vector<16x128xf32>
      %c0_8 = arith.constant 0 : index
      %c0_9 = arith.constant 0 : index
      %16 = vector.load %arg3[%c0_8, %c0_9] : memref<16x128xf32, #tpu.memory_space<vmem>>, vector<16x128xf32>
      %c0_10 = arith.constant 0 : index
      %c0_11 = arith.constant 0 : index
      %c0_12 = arith.constant 0 : index
      %17 = vector.load %arg4[%c0_10, %c0_11, %c0_12] : memref<1x8x128xf32, #tpu.memory_space<vmem>>, vector<1x8x128xf32>
      %18 = vector.shape_cast %17 : vector<1x8x128xf32> to vector<8x128xf32>
      %19 = arith.subf %15, %16 : vector<16x128xf32>
      %20 = math.absf %19 : vector<16x128xf32>
      %21 = vector.shape_cast %20 : vector<16x128xf32> to vector<2x8x128xf32>
      %cst = arith.constant dense<0.000000e+00> : vector<8x128xf32>
      %22 = vector.multi_reduction <add>, %21, %cst [0] : vector<2x8x128xf32> to vector<8x128xf32>
      %23 = arith.addf %18, %22 : vector<8x128xf32>
      %c0_13 = arith.constant 0 : index
      %c0_14 = arith.constant 0 : index
      %c0_15 = arith.constant 0 : index
      %24 = vector.load %arg4[%c0_13, %c0_14, %c0_15] : memref<1x8x128xf32, #tpu.memory_space<vmem>>, vector<1x8x128xf32>
      %25 = vector.shape_cast %24 : vector<1x8x128xf32> to vector<8x128xf32>
      %26 = vector.shape_cast %23 : vector<8x128xf32> to vector<1x8x128xf32>
      tpu.vector_store %arg4[%c0_13, %c0_14, %c0_15], %26 {strides = array<i32>} : memref<1x8x128xf32, #tpu.memory_space<vmem>>, vector<1x8x128xf32>,
      %c0_16 = arith.constant 0 : index
      %c0_17 = arith.constant 0 : index
      %c0_18 = arith.constant 0 : index
      %27 = vector.load %arg5[%c0_16, %c0_17, %c0_18] : memref<1x8x128xf32, #tpu.memory_space<vmem>>, vector<1x8x128xf32>
      %28 = vector.shape_cast %27 : vector<1x8x128xf32> to vector<8x128xf32>
      %29 = vector.shape_cast %15 : vector<16x128xf32> to vector<2x8x128xf32>
      %cst_19 = arith.constant dense<0.000000e+00> : vector<8x128xf32>
      %30 = vector.multi_reduction <add>, %29, %cst_19 [0] : vector<2x8x128xf32> to vector<8x128xf32>
      %31 = arith.addf %28, %30 : vector<8x128xf32>
      %c0_20 = arith.constant 0 : index
      %c0_21 = arith.constant 0 : index
      %c0_22 = arith.constant 0 : index
      %32 = vector.load %arg5[%c0_20, %c0_21, %c0_22] : memref<1x8x128xf32, #tpu.memory_space<vmem>>, vector<1x8x128xf32>
      %33 = vector.shape_cast %32 : vector<1x8x128xf32> to vector<8x128xf32>
      %34 = vector.shape_cast %31 : vector<8x128xf32> to vector<1x8x128xf32>
      tpu.vector_store %arg5[%c0_20, %c0_21, %c0_22], %34 {strides = array<i32>} : memref<1x8x128xf32, #tpu.memory_space<vmem>>, vector<1x8x128xf32>,
    } else {
    }
    %c0_i32_4 = arith.constant 0 : i32
    %10 = arith.cmpi sgt, %6, %c0_i32_4 : i32
    %c16_i32_5 = arith.constant 16 : i32
    %11 = arith.cmpi slt, %6, %c16_i32_5 : i32
    %12 = arith.andi %10, %11 : i1
    %13 = arith.extui %12 : i1 to i32
    %c0_i32_6 = arith.constant 0 : i32
    %14 = arith.cmpi ne, %13, %c0_i32_6 : i32
    scf.if %14 {
      %c0 = arith.constant 0 : index
      %c0_7 = arith.constant 0 : index
      %15 = vector.load %arg2[%c0, %c0_7] : memref<16x128xf32, #tpu.memory_space<vmem>>, vector<16x128xf32>
      %c0_8 = arith.constant 0 : index
      %c0_9 = arith.constant 0 : index
      %16 = vector.load %arg3[%c0_8, %c0_9] : memref<16x128xf32, #tpu.memory_space<vmem>>, vector<16x128xf32>
      %17 = tpu.iota {dimensions = array<i32: 0>} : vector<16x128xi32>
      %18 = vector.broadcast %6 : i32 to vector<16x128xi32>
      %19 = arith.cmpi slt, %17, %18 : vector<16x128xi32>
      %20 = arith.subf %15, %16 : vector<16x128xf32>
      %21 = math.absf %20 : vector<16x128xf32>
      %cst = arith.constant 0.000000e+00 : f32
      %22 = vector.broadcast %cst : f32 to vector<16x128xf32>
      %23 = arith.select %19, %21, %22 : vector<16x128xi1>, vector<16x128xf32>
      %cst_10 = arith.constant 0.000000e+00 : f32
      %24 = vector.broadcast %cst_10 : f32 to vector<16x128xf32>
      %25 = arith.select %19, %15, %24 : vector<16x128xi1>, vector<16x128xf32>
      %c0_11 = arith.constant 0 : index
      %c0_12 = arith.constant 0 : index
      %c0_13 = arith.constant 0 : index
      %26 = vector.load %arg4[%c0_11, %c0_12, %c0_13] : memref<1x8x128xf32, #tpu.memory_space<vmem>>, vector<1x8x128xf32>
      %27 = vector.shape_cast %26 : vector<1x8x128xf32> to vector<8x128xf32>
      %28 = vector.shape_cast %23 : vector<16x128xf32> to vector<2x8x128xf32>
      %cst_14 = arith.constant dense<0.000000e+00> : vector<8x128xf32>
      %29 = vector.multi_reduction <add>, %28, %cst_14 [0] : vector<2x8x128xf32> to vector<8x128xf32>
      %30 = arith.addf %27, %29 : vector<8x128xf32>
      %c0_15 = arith.constant 0 : index
      %c0_16 = arith.constant 0 : index
      %c0_17 = arith.constant 0 : index
      %31 = vector.load %arg4[%c0_15, %c0_16, %c0_17] : memref<1x8x128xf32, #tpu.memory_space<vmem>>, vector<1x8x128xf32>
      %32 = vector.shape_cast %31 : vector<1x8x128xf32> to vector<8x128xf32>
      %33 = vector.shape_cast %30 : vector<8x128xf32> to vector<1x8x128xf32>
      tpu.vector_store %arg4[%c0_15, %c0_16, %c0_17], %33 {strides = array<i32>} : memref<1x8x128xf32, #tpu.memory_space<vmem>>, vector<1x8x128xf32>,
      %c0_18 = arith.constant 0 : index
      %c0_19 = arith.constant 0 : index
      %c0_20 = arith.constant 0 : index
      %34 = vector.load %arg5[%c0_18, %c0_19, %c0_20] : memref<1x8x128xf32, #tpu.memory_space<vmem>>, vector<1x8x128xf32>
      %35 = vector.shape_cast %34 : vector<1x8x128xf32> to vector<8x128xf32>
      %36 = vector.shape_cast %25 : vector<16x128xf32> to vector<2x8x128xf32>
      %cst_21 = arith.constant dense<0.000000e+00> : vector<8x128xf32>
      %37 = vector.multi_reduction <add>, %36, %cst_21 [0] : vector<2x8x128xf32> to vector<8x128xf32>
      %38 = arith.addf %35, %37 : vector<8x128xf32>
      %c0_22 = arith.constant 0 : index
      %c0_23 = arith.constant 0 : index
      %c0_24 = arith.constant 0 : index
      %39 = vector.load %arg5[%c0_22, %c0_23, %c0_24] : memref<1x8x128xf32, #tpu.memory_space<vmem>>, vector<1x8x128xf32>
      %40 = vector.shape_cast %39 : vector<1x8x128xf32> to vector<8x128xf32>
      %41 = vector.shape_cast %38 : vector<8x128xf32> to vector<1x8x128xf32>
      tpu.vector_store %arg5[%c0_22, %c0_23, %c0_24], %41 {strides = array<i32>} : memref<1x8x128xf32, #tpu.memory_space<vmem>>, vector<1x8x128xf32>,
    } else {
    }
    return
  }
  func.func @transform_0(%arg0: i32, %arg1: i32) -> (i32, i32) {
    %c1_i32 = arith.constant 1 : i32
    %0 = arith.muli %arg0, %c1_i32 : i32
    %1 = arith.addi %0, %arg1 : i32
    %c0_i32 = arith.constant 0 : i32
    %2 = arith.minsi %1, %c0_i32 : i32
    %c0_i32_0 = arith.constant 0 : i32
    %c0_i32_1 = arith.constant 0 : i32
    return %2, %c0_i32_0 : i32, i32
  }
  func.func @transform_1(%arg0: i32, %arg1: i32) -> (i32, i32) {
    %c1_i32 = arith.constant 1 : i32
    %0 = arith.muli %arg0, %c1_i32 : i32
    %1 = arith.addi %0, %arg1 : i32
    %c0_i32 = arith.constant 0 : i32
    %2 = arith.minsi %1, %c0_i32 : i32
    %c0_i32_0 = arith.constant 0 : i32
    %c0_i32_1 = arith.constant 0 : i32
    return %2, %c0_i32_0 : i32, i32
  }
  func.func @transform_2(%arg0: i32, %arg1: i32) -> (i32, i32, i32) {
    %c0_i32 = arith.constant 0 : i32
    %c0_i32_0 = arith.constant 0 : i32
    %c0_i32_1 = arith.constant 0 : i32
    return %arg0, %c0_i32, %c0_i32_0 : i32, i32, i32
  }
  func.func @transform_3(%arg0: i32, %arg1: i32) -> (i32, i32, i32) {
    %c0_i32 = arith.constant 0 : i32
    %c0_i32_0 = arith.constant 0 : i32
    %c0_i32_1 = arith.constant 0 : i32
    return %arg0, %c0_i32, %c0_i32_0 : i32, i32, i32
  }
}

</mosaic_0001>

<llo_original>
// kernel: tpu_custom_call.1
$region0: #{tpu_custom_call.1}
  #allocation0 [shape = 'u32[]', space=smem, size = 0x4, offset = 0x4, fixed_abs, tag = 'smem constant byte address 0x4 - core index']
  #allocation1 [shape = 'u32[144,128]{1,0:T(1,128)}', space=vmem, size = 0x12000, scoped, tag = 'internal scratch']
  %s0 = inlined_call_operand.hbm [shape: f32[16,128], index: 0, kind: input, shape index: {}]
  %s1 = inlined_call_operand.hbm [shape: f32[16,128], index: 1, kind: input, shape index: {}]
  %s2 = inlined_call_operand.hbm [shape: f32[1,8,128], index: 2, kind: output, shape index: {0}]
  %s3 = inlined_call_operand.hbm [shape: f32[1,8,128], index: 3, kind: output, shape index: {1}]
  %4 = xla_tuple %s2, %s3
  %s5 = sld [smem:[#allocation0]]
  $region46: #{tpu_custom_call.1} parent=0
    _
  %s7 = ssub.s32 1, %s5
  %s8 = scalar_select 0, %s7, %s5
  $region1: #{tpu_custom_call.1} parent=0
    #allocation2 [shape = 'u8[8192]{0}', space=vmem, size = 0x2000, scoped, tag = 'input window, operand 0, single buffered']
    #allocation3 [shape = 's32[1]{0}', space=sflag, size = 0x4, scoped, tag = 'scoped memory for tpu_custom_call.1']
    #allocation4 [shape = 's32[1]{0}', space=sflag, size = 0x4, scoped, tag = 'scoped memory for tpu_custom_call.1']
    #allocation5 [shape = 'u8[8192]{0}', space=vmem, size = 0x2000, scoped, tag = 'input window, operand 1, single buffered']
    #allocation6 [shape = 's32[1]{0}', space=sflag, size = 0x4, scoped, tag = 'scoped memory for tpu_custom_call.1']
    #allocation7 [shape = 'u8[4096]{0}', space=vmem, size = 0x1000, scoped, tag = 'output window, operand 0, single buffered']
    #allocation8 [shape = 'u8[4096]{0}', space=vmem, size = 0x1000, scoped, tag = 'output window, operand 1, single buffered']
    #allocation9 [shape = 's32[1]{0}', space=sflag, size = 0x4, scoped, tag = 'scoped memory for tpu_custom_call.1']
    %9 = vsyncpa [#allocation3], 0
    %10 = vsyncpa [#allocation6], 0
    %11 = vsyncpa [#allocation4], 0
    %12 = vsyncpa [#allocation9], 0
    // Predicated region
    $region2: #{tpu_custom_call.1} parent=1 // pred_check
      _
    $region3: #{tpu_custom_call.1} parent=1 // pred_check_branch
      %14 = sbr.rel (0) target = $region5
    $region4: #{tpu_custom_call.1} parent=1 // pred_region
      %s15 = sadd.s32 0, 0
      %p16 = scmp.lt.s32.totalorder %s15, 0
      %s17 = scalar_select %p16, %s15, 0
      %s18 = smul.u32 2, %s17
      %s20 = ssub.s32 256, 256
      %21 = vsyncadd [#allocation3], %s20
      %s22 = smul.addr %s18, 128
      %s23 = scalar_lea.hbm %s0, %s22
      %s24 = sshll.u32 [#allocation2], 4
      %s25 = int_to_ptr.vmem [resolvable:$true] %s24
      %30 = dma.hbm_to_vmem [thread:$0]  %s23, 256, %s25, [#allocation3], 128, 128, 8
    $region5: #{tpu_custom_call.1} parent=1 // pred_fallthru
      _
    // Predicated region
    $region6: #{tpu_custom_call.1} parent=1 // pred_check
      _
    $region7: #{tpu_custom_call.1} parent=1 // pred_check_branch
      %32 = sbr.rel (0) target = $region9
    $region8: #{tpu_custom_call.1} parent=1 // pred_region
      %s33 = sadd.s32 0, 0
      %p34 = scmp.lt.s32.totalorder %s33, 0
      %s35 = scalar_select %p34, %s33, 0
      %s36 = smul.u32 2, %s35
      %s38 = ssub.s32 256, 256
      %39 = vsyncadd [#allocation6], %s38
      %s40 = smul.addr %s36, 128
      %s41 = scalar_lea.hbm %s1, %s40
      %s42 = sshll.u32 [#allocation5], 4
      %s43 = int_to_ptr.vmem [resolvable:$true] %s42
      %48 = dma.hbm_to_vmem [thread:$0]  %s41, 256, %s43, [#allocation6], 128, 128, 8
    $region9: #{tpu_custom_call.1} parent=1 // pred_fallthru
      _
    // Predicated region
    $region10: #{tpu_custom_call.1} parent=1 // pred_check
      _
    $region11: #{tpu_custom_call.1} parent=1 // pred_check_branch
      %50 = sbr.rel (0) target = $region13
    $region12: #{tpu_custom_call.1} parent=1 // pred_region
      %51 = dma.done [#allocation3], 256
    $region13: #{tpu_custom_call.1} parent=1 // pred_fallthru
      _
    // Predicated region
    $region14: #{tpu_custom_call.1} parent=1 // pred_check
      _
    $region15: #{tpu_custom_call.1} parent=1 // pred_check_branch
      %53 = sbr.rel (0) target = $region17
    $region16: #{tpu_custom_call.1} parent=1 // pred_region
      %54 = dma.done [#allocation6], 256
    $region17: #{tpu_custom_call.1} parent=1 // pred_fallthru
      _
    %s55 = sadd.s32 0, 0
    %p56 = scmp.lt.s32.totalorder %s55, 0
    %s57 = scalar_select %p56, %s55, 0
    %s58 = smul.u32 2, %s57
    %s59 = sadd.s32 0, 0
    %p60 = scmp.lt.s32.totalorder %s59, 0
    %s61 = scalar_select %p60, %s59, 0
    %s62 = smul.u32 2, %s61
    %p63 = scmp.eq.s32.totalorder 0, 0
    // Predicated region
    $region18: #{tpu_custom_call.1} parent=1 // pred_check
      %p64 = pneg %p63
    $region19: #{tpu_custom_call.1} parent=1 // pred_check_branch
      %66 = sbr.rel (%p64) target = $region21
    $region20: #{tpu_custom_call.1} parent=1 // pred_region
      %67 = vst [vmem:[#allocation7] sm:$0xff] 0.0
      %68 = vst [vmem:[#allocation8] sm:$0xff] 0.0
    $region21: #{tpu_custom_call.1} parent=1 // pred_fallthru
      _
    %s69 = sadd.s32 0, 0
    %s70 = smul.u32 %s69, 16
    %s71 = ssub.s32 16, %s70
    %p72 = scmp.ge.s32.totalorder %s71, 16
    // Predicated region
    $region22: #{tpu_custom_call.1} parent=1 // pred_check
      %p73 = pneg %p72
    $region23: #{tpu_custom_call.1} parent=1 // pred_check_branch
      %75 = sbr.rel (%p73) target = $region25
    $region24: #{tpu_custom_call.1} parent=1 // pred_region
      %v76 = vld [vmem:[#allocation2] sm:$0xff]
      %v77 = vld [vmem:[#allocation2 + $0x8] sm:$0xff]
      %v78 = vld [vmem:[#allocation5] sm:$0xff]
      %v79 = vld [vmem:[#allocation5 + $0x8] sm:$0xff]
      %v80 = vld [vmem:[#allocation7] sm:$0xff]
      %v81 = vsub.f32 %v76, %v78
      %v82 = vsub.f32 %v77, %v79
      %v83 = vand.u32 2147483647, %v81
      %v84 = vand.u32 2147483647, %v82
      %v85 = vadd.f32 %v83, %v84
      %v86 = vadd.f32 %v80, %v85
      %87 = vst [vmem:[#allocation7] sm:$0xff] %v86
      %v88 = vld [vmem:[#allocation8] sm:$0xff]
      %v89 = vadd.f32 %v76, %v77
      %v90 = vadd.f32 %v88, %v89
      %91 = vst [vmem:[#allocation8] sm:$0xff] %v90
    $region25: #{tpu_custom_call.1} parent=1 // pred_fallthru
      _
    %p92 = scmp.gt.s32.totalorder %s71, 0
    %p93 = scmp.lt.s32.totalorder %s71, 16
    %p94 = pnand %p92, %p93
    %p95 = pneg %p94
    // Predicated region
    $region26: #{tpu_custom_call.1} parent=1 // pred_check
      _
    $region27: #{tpu_custom_call.1} parent=1 // pred_check_branch
      %97 = sbr.rel (%p94) target = $region29
    $region28: #{tpu_custom_call.1} parent=1 // pred_region
      %v98 = vld [vmem:[#allocation2] sm:$0xff]
      %v99 = vld [vmem:[#allocation2 + $0x8] sm:$0xff]
      %v100 = vld [vmem:[#allocation5] sm:$0xff]
      %v101 = vld [vmem:[#allocation5 + $0x8] sm:$0xff]
      %v102 = vlaneseq
      %v103 = vshrl.u32 %v102, 7
      %v104 = vadd.s32 %v103, 8
      %v105 = vstv %s71
      %vm106 = vcmp.lt.s32.totalorder %v103, %v105
      %vm107 = vcmp.lt.s32.totalorder %v104, %v105
      %v108 = vsub.f32 %v98, %v100
      %v109 = vsub.f32 %v99, %v101
      %v110 = vand.u32 2147483647, %v108
      %v111 = vand.u32 2147483647, %v109
      %v112 = vsel %vm106, %v110, 0.0
      %v113 = vsel %vm107, %v111, 0.0
      %v114 = vsel %vm106, %v98, 0.0
      %v115 = vsel %vm107, %v99, 0.0
      %v116 = vld [vmem:[#allocation7] sm:$0xff]
      %v117 = vadd.f32 %v112, %v113
      %v118 = vadd.f32 %v116, %v117
      %119 = vst [vmem:[#allocation7] sm:$0xff] %v118
      %v120 = vld [vmem:[#allocation8] sm:$0xff]
      %v121 = vadd.f32 %v114, %v115
      %v122 = vadd.f32 %v120, %v121
      %123 = vst [vmem:[#allocation8] sm:$0xff] %v122
    $region29: #{tpu_custom_call.1} parent=1 // pred_fallthru
      _
    // Predicated region
    $region30: #{tpu_custom_call.1} parent=1 // pred_check
      _
    $region31: #{tpu_custom_call.1} parent=1 // pred_check_branch
      %125 = sbr.rel (0) target = $region33
    $region32: #{tpu_custom_call.1} parent=1 // pred_region
      %s127 = ssub.s32 128, 128
      %128 = vsyncadd [#allocation4], %s127
      %s130 = sshll.u32 [#allocation7], 4
      %s131 = int_to_ptr.vmem [resolvable:$true] %s130
      %133 = dma.vmem_to_hbm [thread:$0]  %s131, 128, %s2, [#allocation4]
    $region33: #{tpu_custom_call.1} parent=1 // pred_fallthru
      _
    // Predicated region
    $region34: #{tpu_custom_call.1} parent=1 // pred_check
      _
    $region35: #{tpu_custom_call.1} parent=1 // pred_check_branch
      %135 = sbr.rel (0) target = $region37
    $region36: #{tpu_custom_call.1} parent=1 // pred_region
      %s137 = ssub.s32 128, 128
      %138 = vsyncadd [#allocation9], %s137
      %s140 = sshll.u32 [#allocation8], 4
      %s141 = int_to_ptr.vmem [resolvable:$true] %s140
      %143 = dma.vmem_to_hbm [thread:$0]  %s141, 128, %s3, [#allocation9]
    $region37: #{tpu_custom_call.1} parent=1 // pred_fallthru
      _
    // Predicated region
    $region38: #{tpu_custom_call.1} parent=1 // pred_check
      _
    $region39: #{tpu_custom_call.1} parent=1 // pred_check_branch
      %145 = sbr.rel (0) target = $region41
    $region40: #{tpu_custom_call.1} parent=1 // pred_region
      %146 = dma.done [#allocation4], 128
    $region41: #{tpu_custom_call.1} parent=1 // pred_fallthru
      _
    // Predicated region
    $region42: #{tpu_custom_call.1} parent=1 // pred_check
      _
    $region43: #{tpu_custom_call.1} parent=1 // pred_check_branch
      %148 = sbr.rel (0) target = $region45
    $region44: #{tpu_custom_call.1} parent=1 // pred_region
      %149 = dma.done [#allocation9], 128
    $region45: #{tpu_custom_call.1} parent=1 // pred_fallthru
      _
    %150 = vsyncpa [#allocation3], 1
    %151 = vsyncpa [#allocation6], 1
    %152 = vsyncpa [#allocation4], 1
    %153 = vsyncpa [#allocation9], 1

</llo_original>
